<compile_context>
chip_gen: v5e
topology: v5e:2x2
jax: 0.10.0
libtpu: 0.0.40
codegen_flags: <defaults>
</compile_context>

<pallas_src>
import functools

import jax
import jax.numpy as jnp
from jax.experimental import pallas as pl
from jax.experimental.pallas import tpu as pltpu

EPS = 1e-5  # nn.LayerNorm default


def _round_up(x, m):
    return ((x + m - 1) // m) * m


def _layernorm(h, gamma, beta):
    # One-pass variance: var = E[h^2] - E[h]^2 (one XLU reduce fewer per LN).
    mu = jnp.mean(h, axis=-1, keepdims=True)
    var = jnp.mean(h * h, axis=-1, keepdims=True) - mu * mu
    return (h - mu) * jax.lax.rsqrt(var + EPS) * gamma + beta


def _silu(h):
    return h * jax.nn.sigmoid(h)


def _fused_head_kernel(feat_ref,
                       w1c_ref, b1c_ref, g1_ref, be1_ref, gs1_ref, bes1_ref,
                       w2_ref, b2_ref, g2_ref, be2_ref,
                       w3p_ref, b3p_ref,
                       ws2_ref, bs2_ref,
                       out_ref,
                       *, hidden_dim, out_dim):
    x = feat_ref[...]                                   # (TB, in_dim) bf16

    # ---- fused first layer: [w1 || ws1] in one MXU pass (N = 2*hidden) ----
    h1s = (jnp.dot(x, w1c_ref[...], preferred_element_type=jnp.float32)
           + b1c_ref[...])                              # (TB, 2*hidden) f32
    h1 = h1s[:, :hidden_dim]                            # MLPHead branch
    s1 = h1s[:, hidden_dim:]                            # sigma_head branch

    h1 = _silu(_layernorm(h1, g1_ref[...], be1_ref[...]))
    s1 = _silu(_layernorm(s1, gs1_ref[...], bes1_ref[...]))

    # ---- MLPHead layers 2 and 3 ----
    h2 = (jnp.dot(h1.astype(w2_ref.dtype), w2_ref[...],
                  preferred_element_type=jnp.float32) + b2_ref[...])
    h2 = _silu(_layernorm(h2, g2_ref[...], be2_ref[...]))
    pred = (jnp.dot(h2.astype(w3p_ref.dtype), w3p_ref[...],
                    preferred_element_type=jnp.float32) + b3p_ref[...])
    # pred: (TB, OUT_PAD); columns >= out_dim are zero (zero-padded w3/b3).

    # ---- sigma: N=1 matmul replaced by VPU multiply + lane reduce ----
    sigma = jnp.sum(s1 * ws2_ref[...], axis=-1, keepdims=True) + bs2_ref[...]

    # ---- single lane-dense output slab: pred in cols [0,out_dim),
    #      sigma in col out_dim ----
    col = jax.lax.broadcasted_iota(jnp.int32, pred.shape, 1)
    out_ref[...] = jnp.where(col == out_dim, sigma, pred)


@jax.jit
def contrastive_fine_tuner_forward(lc, spectra, params):
    """Pallas implementation of ContrastiveFineTuner.forward
    (use_sigma=True, head_type='mlp')."""
    B = lc.shape[0]

    # ---------- backbone stub (external `self.model`) ----------
    # Produces {'z1': ..., 'z2': ...}; features = cat((z1, z2), dim=1).
    z1 = lc.reshape(B, -1).astype(jnp.float32)
    z2 = spectra.reshape(B, -1).astype(jnp.float32)
    features = jnp.concatenate([z1, z2], axis=1)        # needed for pred_dict

    in_dim = features.shape[1]
    hidden_dim = params["w1"].shape[1]
    out_dim = params["w3"].shape[1]
    out_pad = _round_up(out_dim + 1, 128)               # lane-dense output slab

    # ---------- batch tiling ----------
    TB = 256 if B >= 256 else _round_up(B, 8)
    B_pad = _round_up(B, TB)
    grid = (B_pad // TB,)

    feats_in = features
    if B_pad != B:
        feats_in = jnp.pad(features, ((0, B_pad - B), (0, 0)))
    feats_in = feats_in.astype(jnp.bfloat16)            # halve activation DMA

    # ---------- weight preparation (bf16 MXU operands, fused / padded) ----------
    wdt = jnp.bfloat16
    w1c = jnp.concatenate([params["w1"], params["ws1"]], axis=1).astype(wdt)
    b1c = jnp.concatenate([params["b1"], params["bs1"]], axis=1)        # f32
    w2 = params["w2"].astype(wdt)
    w3p = jnp.pad(params["w3"], ((0, 0), (0, out_pad - out_dim))).astype(wdt)
    b3p = jnp.pad(params["b3"], ((0, 0), (0, out_pad - out_dim)))       # f32
    ws2_row = params["ws2"].reshape(1, hidden_dim)                      # f32 (VPU)
    bs2 = params["bs2"]                                                 # (1,1) f32

    operands = (
        feats_in,
        w1c, b1c, params["g1"], params["be1"], params["gs1"], params["bes1"],
        w2, params["b2"], params["g2"], params["be2"],
        w3p, b3p,
        ws2_row, bs2,
    )

    def const_spec(a):
        return pl.BlockSpec(a.shape, lambda i: (0,) * a.ndim)

    in_specs = [pl.BlockSpec((TB, in_dim), lambda i: (i, 0))]
    in_specs += [const_spec(a) for a in operands[1:]]
    out_spec = pl.BlockSpec((TB, out_pad), lambda i: (i, 0))

    # ---------- VMEM budget / cost hints ----------
    weight_bytes = (w1c.size + w2.size + w3p.size) * 2 + 4 * (
        b1c.size + b3p.size + 4 * hidden_dim * 6 + hidden_dim + 1)
    act_bytes = 2 * (TB * in_dim * 2 + TB * out_pad * 4)   # double-buffered tiles
    vmem_limit = int(min(100 * 1024 * 1024,
                         max(32 * 1024 * 1024,
                             2 * (weight_bytes + act_bytes) + (8 << 20))))

    flops = 2 * B_pad * (in_dim * 2 * hidden_dim
                         + hidden_dim * hidden_dim
                         + hidden_dim * out_pad
                         + hidden_dim)                    # + sigma reduce
    cost = pl.CostEstimate(
        flops=int(flops),
        transcendentals=int(3 * B_pad * hidden_dim),      # 3 SiLU sigmoids
        bytes_accessed=int(weight_bytes + B_pad * in_dim * 2
                           + B_pad * out_pad * 4),
    )

    combined = pl.pallas_call(
        functools.partial(_fused_head_kernel,
                          hidden_dim=hidden_dim, out_dim=out_dim),
        out_shape=jax.ShapeDtypeStruct((B_pad, out_pad), jnp.float32),
        grid=grid,
        in_specs=in_specs,
        out_specs=out_spec,
        compiler_params=pltpu.CompilerParams(
            dimension_semantics=("parallel",),
            vmem_limit_bytes=vmem_limit,
        ),
        cost_estimate=cost,
    )(*operands)

    predictions = combined[:B, :out_dim]
    sigma = combined[:B, out_dim:out_dim + 1]

    pred_dict = {
        "head_features": features,
        "eigen_projection": jnp.zeros_like(features),
    }
    return predictions, sigma, pred_dict


def init_params(key, in_dim, hidden_dim, out_dim):
    """Deterministic synthetic parameter init (weights stored [in, out])."""
    ks = jax.random.split(key, 6)
    scale = 0.02
    p = {
        # MLPHead: Linear(in,h) -> LN(h) -> SiLU -> Linear(h,h) -> LN(h) -> SiLU -> Linear(h,out)
        "w1": jax.random.normal(ks[0], (in_dim, hidden_dim), jnp.float32) * scale,
        "b1": jnp.zeros((1, hidden_dim), jnp.float32),
        "g1": jnp.ones((1, hidden_dim), jnp.float32),
        "be1": jnp.zeros((1, hidden_dim), jnp.float32),
        "w2": jax.random.normal(ks[1], (hidden_dim, hidden_dim), jnp.float32) * scale,
        "b2": jnp.zeros((1, hidden_dim), jnp.float32),
        "g2": jnp.ones((1, hidden_dim), jnp.float32),
        "be2": jnp.zeros((1, hidden_dim), jnp.float32),
        "w3": jax.random.normal(ks[2], (hidden_dim, out_dim), jnp.float32) * scale,
        "b3": jnp.zeros((1, out_dim), jnp.float32),
        # sigma_head: Linear(in,h) -> LN(h) -> SiLU -> Linear(h,1)
        "ws1": jax.random.normal(ks[3], (in_dim, hidden_dim), jnp.float32) * scale,
        "bs1": jnp.zeros((1, hidden_dim), jnp.float32),
        "gs1": jnp.ones((1, hidden_dim), jnp.float32),
        "bes1": jnp.zeros((1, hidden_dim), jnp.float32),
        "ws2": jax.random.normal(ks[4], (hidden_dim, 1), jnp.float32) * scale,
        "bs2": jnp.zeros((1, 1), jnp.float32),
    }
    return p


if __name__ == "__main__":
    key = jax.random.PRNGKey(0)
    k_lc, k_sp, k_par = jax.random.split(key, 3)

    # Small, self-consistent shapes: batch=8, z1/z2 dims 16 -> in_dim=32,
    # hidden_dim=128 (lane-aligned), out_dim=4.
    B, Z, HIDDEN, OUT = 8, 16, 128, 4
    lc = jax.random.normal(k_lc, (B, Z), jnp.float32)
    spectra = jax.random.normal(k_sp, (B, Z), jnp.float32)

    params = init_params(k_par, in_dim=2 * Z, hidden_dim=HIDDEN, out_dim=OUT)

    predictions, sigma, pred_dict = contrastive_fine_tuner_forward(lc, spectra, params)
    jax.block_until_ready((predictions, sigma, pred_dict))

    assert predictions.shape == (B, OUT)
    assert sigma.shape == (B, 1)
    assert pred_dict["head_features"].shape == (B, 2 * Z)
    assert pred_dict["eigen_projection"].shape == (B, 2 * Z)
    assert bool(jnp.all(jnp.isfinite(predictions))) and bool(jnp.all(jnp.isfinite(sigma)))
    print("KERNEL_OK")
</pallas_src>

<mosaic_0001>
module attributes {stable_mosaic.version = 11 : i64} {
  func.func @_fused_head_kernel(%arg0: i32, %arg1: memref<8x32xbf16, #tpu.memory_space<vmem>>, %arg2: memref<32x256xbf16, #tpu.memory_space<vmem>>, %arg3: memref<1x256xf32, #tpu.memory_space<vmem>>, %arg4: memref<1x128xf32, #tpu.memory_space<vmem>>, %arg5: memref<1x128xf32, #tpu.memory_space<vmem>>, %arg6: memref<1x128xf32, #tpu.memory_space<vmem>>, %arg7: memref<1x128xf32, #tpu.memory_space<vmem>>, %arg8: memref<128x128xbf16, #tpu.memory_space<vmem>>, %arg9: memref<1x128xf32, #tpu.memory_space<vmem>>, %arg10: memref<1x128xf32, #tpu.memory_space<vmem>>, %arg11: memref<1x128xf32, #tpu.memory_space<vmem>>, %arg12: memref<128x128xbf16, #tpu.memory_space<vmem>>, %arg13: memref<1x128xf32, #tpu.memory_space<vmem>>, %arg14: memref<1x128xf32, #tpu.memory_space<vmem>>, %arg15: memref<1x1xf32, #tpu.memory_space<vmem>>, %arg16: memref<8x128xf32, #tpu.memory_space<vmem>>) attributes {dimension_semantics = [#tpu.dimension_semantics<parallel>], iteration_bounds = array<i64: 1>, scalar_prefetch = 0 : i64, scratch_operands = 0 : i64, tpu.core_type = #tpu.core_type<tc>, window_params = [{transform_indices = @transform_0, window_bounds = array<i64: 8, 32>}, {pipeline_mode = #tpu.pipeline_mode<synchronous>, transform_indices = @transform_1, window_bounds = array<i64: 32, 256>}, {pipeline_mode = #tpu.pipeline_mode<synchronous>, transform_indices = @transform_2, window_bounds = array<i64: 1, 256>}, {pipeline_mode = #tpu.pipeline_mode<synchronous>, transform_indices = @transform_3, window_bounds = array<i64: 1, 128>}, {pipeline_mode = #tpu.pipeline_mode<synchronous>, transform_indices = @transform_4, window_bounds = array<i64: 1, 128>}, {pipeline_mode = #tpu.pipeline_mode<synchronous>, transform_indices = @transform_5, window_bounds = array<i64: 1, 128>}, {pipeline_mode = #tpu.pipeline_mode<synchronous>, transform_indices = @transform_6, window_bounds = array<i64: 1, 128>}, {pipeline_mode = #tpu.pipeline_mode<synchronous>, transform_indices = @transform_7, window_bounds = array<i64: 128, 128>}, {pipeline_mode = #tpu.pipeline_mode<synchronous>, transform_indices = @transform_8, window_bounds = array<i64: 1, 128>}, {pipeline_mode = #tpu.pipeline_mode<synchronous>, transform_indices = @transform_9, window_bounds = array<i64: 1, 128>}, {pipeline_mode = #tpu.pipeline_mode<synchronous>, transform_indices = @transform_10, window_bounds = array<i64: 1, 128>}, {pipeline_mode = #tpu.pipeline_mode<synchronous>, transform_indices = @transform_11, window_bounds = array<i64: 128, 128>}, {pipeline_mode = #tpu.pipeline_mode<synchronous>, transform_indices = @transform_12, window_bounds = array<i64: 1, 128>}, {pipeline_mode = #tpu.pipeline_mode<synchronous>, transform_indices = @transform_13, window_bounds = array<i64: 1, 128>}, {pipeline_mode = #tpu.pipeline_mode<synchronous>, transform_indices = @transform_14, window_bounds = array<i64: 1, 1>}, {transform_indices = @transform_15, window_bounds = array<i64: 8, 128>}]} {
    %c0 = arith.constant 0 : index
    %c0_0 = arith.constant 0 : index
    %0 = vector.load %arg1[%c0, %c0_0] : memref<8x32xbf16, #tpu.memory_space<vmem>>, vector<8x32xbf16>
    %c0_1 = arith.constant 0 : index
    %c0_2 = arith.constant 0 : index
    %1 = vector.load %arg2[%c0_1, %c0_2] : memref<32x256xbf16, #tpu.memory_space<vmem>>, vector<32x256xbf16>
    %cst = arith.constant dense<0.000000e+00> : vector<8x256xf32>
    %2 = tpu.matmul %0, %1, %cst {dimension_numbers = #tpu.dot_dimension_numbers<[1], [0], [0], [1], [0, 0, 1, 1], [], []>} : vector<8x32xbf16>, vector<32x256xbf16>, vector<8x256xf32> -> vector<8x256xf32>
    %c0_3 = arith.constant 0 : index
    %c0_4 = arith.constant 0 : index
    %3 = vector.load %arg3[%c0_3, %c0_4] : memref<1x256xf32, #tpu.memory_space<vmem>>, vector<1x256xf32>
    %4 = vector.broadcast %3 : vector<1x256xf32> to vector<8x256xf32>
    %5 = arith.addf %2, %4 : vector<8x256xf32>
    %6 = vector.extract_strided_slice %5 {offsets = [0, 0], sizes = [8, 128], strides = [1, 1]} : vector<8x256xf32> to vector<8x128xf32>
    %7 = vector.extract_strided_slice %5 {offsets = [0, 128], sizes = [8, 128], strides = [1, 1]} : vector<8x256xf32> to vector<8x128xf32>
    %c0_5 = arith.constant 0 : index
    %c0_6 = arith.constant 0 : index
    %8 = vector.load %arg4[%c0_5, %c0_6] : memref<1x128xf32, #tpu.memory_space<vmem>>, vector<1x128xf32>
    %c0_7 = arith.constant 0 : index
    %c0_8 = arith.constant 0 : index
    %9 = vector.load %arg5[%c0_7, %c0_8] : memref<1x128xf32, #tpu.memory_space<vmem>>, vector<1x128xf32>
    %cst_9 = arith.constant dense<0.000000e+00> : vector<8xf32>
    %10 = vector.multi_reduction <add>, %6, %cst_9 [1] : vector<8x128xf32> to vector<8xf32>
    %11 = vector.shape_cast %10 : vector<8xf32> to vector<8x1xf32>
    %cst_10 = arith.constant 1.280000e+02 : f32
    %12 = vector.broadcast %cst_10 : f32 to vector<8x1xf32>
    %13 = arith.divf %11, %12 : vector<8x1xf32>
    %14 = arith.mulf %6, %6 : vector<8x128xf32>
    %cst_11 = arith.constant dense<0.000000e+00> : vector<8xf32>
    %15 = vector.multi_reduction <add>, %14, %cst_11 [1] : vector<8x128xf32> to vector<8xf32>
    %16 = vector.shape_cast %15 : vector<8xf32> to vector<8x1xf32>
    %cst_12 = arith.constant 1.280000e+02 : f32
    %17 = vector.broadcast %cst_12 : f32 to vector<8x1xf32>
    %18 = arith.divf %16, %17 : vector<8x1xf32>
    %19 = arith.mulf %13, %13 : vector<8x1xf32>
    %20 = arith.subf %18, %19 : vector<8x1xf32>
    %21 = vector.broadcast %13 : vector<8x1xf32> to vector<8x128xf32>
    %22 = arith.subf %6, %21 : vector<8x128xf32>
    %cst_13 = arith.constant 9.99999974E-6 : f32
    %23 = vector.broadcast %cst_13 : f32 to vector<8x1xf32>
    %24 = arith.addf %20, %23 : vector<8x1xf32>
    %25 = math.rsqrt %24 : vector<8x1xf32>
    %26 = vector.broadcast %25 : vector<8x1xf32> to vector<8x128xf32>
    %27 = arith.mulf %22, %26 : vector<8x128xf32>
    %28 = vector.broadcast %8 : vector<1x128xf32> to vector<8x128xf32>
    %29 = arith.mulf %27, %28 : vector<8x128xf32>
    %30 = vector.broadcast %9 : vector<1x128xf32> to vector<8x128xf32>
    %31 = arith.addf %29, %30 : vector<8x128xf32>
    %32 = arith.negf %31 : vector<8x128xf32>
    %33 = math.exp %32 : vector<8x128xf32>
    %cst_14 = arith.constant 1.000000e+00 : f32
    %34 = vector.broadcast %cst_14 : f32 to vector<8x128xf32>
    %35 = arith.addf %34, %33 : vector<8x128xf32>
    %36 = arith.divf %34, %35 : vector<8x128xf32>
    %37 = arith.mulf %31, %36 : vector<8x128xf32>
    %c0_15 = arith.constant 0 : index
    %c0_16 = arith.constant 0 : index
    %38 = vector.load %arg6[%c0_15, %c0_16] : memref<1x128xf32, #tpu.memory_space<vmem>>, vector<1x128xf32>
    %c0_17 = arith.constant 0 : index
    %c0_18 = arith.constant 0 : index
    %39 = vector.load %arg7[%c0_17, %c0_18] : memref<1x128xf32, #tpu.memory_space<vmem>>, vector<1x128xf32>
    %cst_19 = arith.constant dense<0.000000e+00> : vector<8xf32>
    %40 = vector.multi_reduction <add>, %7, %cst_19 [1] : vector<8x128xf32> to vector<8xf32>
    %41 = vector.shape_cast %40 : vector<8xf32> to vector<8x1xf32>
    %cst_20 = arith.constant 1.280000e+02 : f32
    %42 = vector.broadcast %cst_20 : f32 to vector<8x1xf32>
    %43 = arith.divf %41, %42 : vector<8x1xf32>
    %44 = arith.mulf %7, %7 : vector<8x128xf32>
    %cst_21 = arith.constant dense<0.000000e+00> : vector<8xf32>
    %45 = vector.multi_reduction <add>, %44, %cst_21 [1] : vector<8x128xf32> to vector<8xf32>
    %46 = vector.shape_cast %45 : vector<8xf32> to vector<8x1xf32>
    %cst_22 = arith.constant 1.280000e+02 : f32
    %47 = vector.broadcast %cst_22 : f32 to vector<8x1xf32>
    %48 = arith.divf %46, %47 : vector<8x1xf32>
    %49 = arith.mulf %43, %43 : vector<8x1xf32>
    %50 = arith.subf %48, %49 : vector<8x1xf32>
    %51 = vector.broadcast %43 : vector<8x1xf32> to vector<8x128xf32>
    %52 = arith.subf %7, %51 : vector<8x128xf32>
    %cst_23 = arith.constant 9.99999974E-6 : f32
    %53 = vector.broadcast %cst_23 : f32 to vector<8x1xf32>
    %54 = arith.addf %50, %53 : vector<8x1xf32>
    %55 = math.rsqrt %54 : vector<8x1xf32>
    %56 = vector.broadcast %55 : vector<8x1xf32> to vector<8x128xf32>
    %57 = arith.mulf %52, %56 : vector<8x128xf32>
    %58 = vector.broadcast %38 : vector<1x128xf32> to vector<8x128xf32>
    %59 = arith.mulf %57, %58 : vector<8x128xf32>
    %60 = vector.broadcast %39 : vector<1x128xf32> to vector<8x128xf32>
    %61 = arith.addf %59, %60 : vector<8x128xf32>
    %62 = arith.negf %61 : vector<8x128xf32>
    %63 = math.exp %62 : vector<8x128xf32>
    %cst_24 = arith.constant 1.000000e+00 : f32
    %64 = vector.broadcast %cst_24 : f32 to vector<8x128xf32>
    %65 = arith.addf %64, %63 : vector<8x128xf32>
    %66 = arith.divf %64, %65 : vector<8x128xf32>
    %67 = arith.mulf %61, %66 : vector<8x128xf32>
    %68 = arith.truncf %37 : vector<8x128xf32> to vector<8x128xbf16>
    %c0_25 = arith.constant 0 : index
    %c0_26 = arith.constant 0 : index
    %69 = vector.load %arg8[%c0_25, %c0_26] : memref<128x128xbf16, #tpu.memory_space<vmem>>, vector<128x128xbf16>
    %cst_27 = arith.constant dense<0.000000e+00> : vector<8x128xf32>
    %70 = tpu.matmul %68, %69, %cst_27 {dimension_numbers = #tpu.dot_dimension_numbers<[1], [0], [0], [1], [0, 0, 1, 1], [], []>} : vector<8x128xbf16>, vector<128x128xbf16>, vector<8x128xf32> -> vector<8x128xf32>
    %c0_28 = arith.constant 0 : index
    %c0_29 = arith.constant 0 : index
    %71 = vector.load %arg9[%c0_28, %c0_29] : memref<1x128xf32, #tpu.memory_space<vmem>>, vector<1x128xf32>
    %72 = vector.broadcast %71 : vector<1x128xf32> to vector<8x128xf32>
    %73 = arith.addf %70, %72 : vector<8x128xf32>
    %c0_30 = arith.constant 0 : index
    %c0_31 = arith.constant 0 : index
    %74 = vector.load %arg10[%c0_30, %c0_31] : memref<1x128xf32, #tpu.memory_space<vmem>>, vector<1x128xf32>
    %c0_32 = arith.constant 0 : index
    %c0_33 = arith.constant 0 : index
    %75 = vector.load %arg11[%c0_32, %c0_33] : memref<1x128xf32, #tpu.memory_space<vmem>>, vector<1x128xf32>
    %cst_34 = arith.constant dense<0.000000e+00> : vector<8xf32>
    %76 = vector.multi_reduction <add>, %73, %cst_34 [1] : vector<8x128xf32> to vector<8xf32>
    %77 = vector.shape_cast %76 : vector<8xf32> to vector<8x1xf32>
    %cst_35 = arith.constant 1.280000e+02 : f32
    %78 = vector.broadcast %cst_35 : f32 to vector<8x1xf32>
    %79 = arith.divf %77, %78 : vector<8x1xf32>
    %80 = arith.mulf %73, %73 : vector<8x128xf32>
    %cst_36 = arith.constant dense<0.000000e+00> : vector<8xf32>
    %81 = vector.multi_reduction <add>, %80, %cst_36 [1] : vector<8x128xf32> to vector<8xf32>
    %82 = vector.shape_cast %81 : vector<8xf32> to vector<8x1xf32>
    %cst_37 = arith.constant 1.280000e+02 : f32
    %83 = vector.broadcast %cst_37 : f32 to vector<8x1xf32>
    %84 = arith.divf %82, %83 : vector<8x1xf32>
    %85 = arith.mulf %79, %79 : vector<8x1xf32>
    %86 = arith.subf %84, %85 : vector<8x1xf32>
    %87 = vector.broadcast %79 : vector<8x1xf32> to vector<8x128xf32>
    %88 = arith.subf %73, %87 : vector<8x128xf32>
    %cst_38 = arith.constant 9.99999974E-6 : f32
    %89 = vector.broadcast %cst_38 : f32 to vector<8x1xf32>
    %90 = arith.addf %86, %89 : vector<8x1xf32>
    %91 = math.rsqrt %90 : vector<8x1xf32>
    %92 = vector.broadcast %91 : vector<8x1xf32> to vector<8x128xf32>
    %93 = arith.mulf %88, %92 : vector<8x128xf32>
    %94 = vector.broadcast %74 : vector<1x128xf32> to vector<8x128xf32>
    %95 = arith.mulf %93, %94 : vector<8x128xf32>
    %96 = vector.broadcast %75 : vector<1x128xf32> to vector<8x128xf32>
    %97 = arith.addf %95, %96 : vector<8x128xf32>
    %98 = arith.negf %97 : vector<8x128xf32>
    %99 = math.exp %98 : vector<8x128xf32>
    %cst_39 = arith.constant 1.000000e+00 : f32
    %100 = vector.broadcast %cst_39 : f32 to vector<8x128xf32>
    %101 = arith.addf %100, %99 : vector<8x128xf32>
    %102 = arith.divf %100, %101 : vector<8x128xf32>
    %103 = arith.mulf %97, %102 : vector<8x128xf32>
    %104 = arith.truncf %103 : vector<8x128xf32> to vector<8x128xbf16>
    %c0_40 = arith.constant 0 : index
    %c0_41 = arith.constant 0 : index
    %105 = vector.load %arg12[%c0_40, %c0_41] : memref<128x128xbf16, #tpu.memory_space<vmem>>, vector<128x128xbf16>
    %cst_42 = arith.constant dense<0.000000e+00> : vector<8x128xf32>
    %106 = tpu.matmul %104, %105, %cst_42 {dimension_numbers = #tpu.dot_dimension_numbers<[1], [0], [0], [1], [0, 0, 1, 1], [], []>} : vector<8x128xbf16>, vector<128x128xbf16>, vector<8x128xf32> -> vector<8x128xf32>
    %c0_43 = arith.constant 0 : index
    %c0_44 = arith.constant 0 : index
    %107 = vector.load %arg13[%c0_43, %c0_44] : memref<1x128xf32, #tpu.memory_space<vmem>>, vector<1x128xf32>
    %108 = vector.broadcast %107 : vector<1x128xf32> to vector<8x128xf32>
    %109 = arith.addf %106, %108 : vector<8x128xf32>
    %c0_45 = arith.constant 0 : index
    %c0_46 = arith.constant 0 : index
    %110 = vector.load %arg14[%c0_45, %c0_46] : memref<1x128xf32, #tpu.memory_space<vmem>>, vector<1x128xf32>
    %111 = vector.broadcast %110 : vector<1x128xf32> to vector<8x128xf32>
    %112 = arith.mulf %67, %111 : vector<8x128xf32>
    %cst_47 = arith.constant dense<0.000000e+00> : vector<8xf32>
    %113 = vector.multi_reduction <add>, %112, %cst_47 [1] : vector<8x128xf32> to vector<8xf32>
    %114 = vector.shape_cast %113 : vector<8xf32> to vector<8x1xf32>
    %c0_48 = arith.constant 0 : index
    %c0_49 = arith.constant 0 : index
    %115 = vector.load %arg15[%c0_48, %c0_49] : memref<1x1xf32, #tpu.memory_space<vmem>>, vector<1x1xf32>
    %116 = vector.broadcast %115 : vector<1x1xf32> to vector<8x1xf32>
    %117 = arith.addf %114, %116 : vector<8x1xf32>
    %118 = tpu.iota {dimensions = array<i32: 1>} : vector<8x128xi32>
    %c4_i32 = arith.constant 4 : i32
    %119 = vector.broadcast %c4_i32 : i32 to vector<8x128xi32>
    %120 = arith.cmpi eq, %118, %119 : vector<8x128xi32>
    %121 = vector.shape_cast %117 : vector<8x1xf32> to vector<8x1xf32>
    %122 = vector.broadcast %121 : vector<8x1xf32> to vector<8x128xf32>
    %123 = arith.select %120, %122, %109 : vector<8x128xi1>, vector<8x128xf32>
    %c0_50 = arith.constant 0 : index
    %c0_51 = arith.constant 0 : index
    %124 = vector.load %arg16[%c0_50, %c0_51] : memref<8x128xf32, #tpu.memory_space<vmem>>, vector<8x128xf32>
    tpu.vector_store %arg16[%c0_50, %c0_51], %123 {strides = array<i32>} : memref<8x128xf32, #tpu.memory_space<vmem>>, vector<8x128xf32>,
    return
  }
  func.func @transform_0(%arg0: i32) -> (i32, i32) {
    %c0_i32 = arith.constant 0 : i32
    %c0_i32_0 = arith.constant 0 : i32
    return %arg0, %c0_i32 : i32, i32
  }
  func.func @transform_1(%arg0: i32) -> (i32, i32) {
    %c0_i32 = arith.constant 0 : i32
    %c0_i32_0 = arith.constant 0 : i32
    %c0_i32_1 = arith.constant 0 : i32
    return %c0_i32, %c0_i32_0 : i32, i32
  }
  func.func @transform_2(%arg0: i32) -> (i32, i32) {
    %c0_i32 = arith.constant 0 : i32
    %c0_i32_0 = arith.constant 0 : i32
    %c0_i32_1 = arith.constant 0 : i32
    return %c0_i32, %c0_i32_0 : i32, i32
  }
  func.func @transform_3(%arg0: i32) -> (i32, i32) {
    %c0_i32 = arith.constant 0 : i32
    %c0_i32_0 = arith.constant 0 : i32
    %c0_i32_1 = arith.constant 0 : i32
    return %c0_i32, %c0_i32_0 : i32, i32
  }
  func.func @transform_4(%arg0: i32) -> (i32, i32) {
    %c0_i32 = arith.constant 0 : i32
    %c0_i32_0 = arith.constant 0 : i32
    %c0_i32_1 = arith.constant 0 : i32
    return %c0_i32, %c0_i32_0 : i32, i32
  }
  func.func @transform_5(%arg0: i32) -> (i32, i32) {
    %c0_i32 = arith.constant 0 : i32
    %c0_i32_0 = arith.constant 0 : i32
    %c0_i32_1 = arith.constant 0 : i32
    return %c0_i32, %c0_i32_0 : i32, i32
  }
  func.func @transform_6(%arg0: i32) -> (i32, i32) {
    %c0_i32 = arith.constant 0 : i32
    %c0_i32_0 = arith.constant 0 : i32
    %c0_i32_1 = arith.constant 0 : i32
    return %c0_i32, %c0_i32_0 : i32, i32
  }
  func.func @transform_7(%arg0: i32) -> (i32, i32) {
    %c0_i32 = arith.constant 0 : i32
    %c0_i32_0 = arith.constant 0 : i32
    %c0_i32_1 = arith.constant 0 : i32
    return %c0_i32, %c0_i32_0 : i32, i32
  }
  func.func @transform_8(%arg0: i32) -> (i32, i32) {
    %c0_i32 = arith.constant 0 : i32
    %c0_i32_0 = arith.constant 0 : i32
    %c0_i32_1 = arith.constant 0 : i32
    return %c0_i32, %c0_i32_0 : i32, i32
  }
  func.func @transform_9(%arg0: i32) -> (i32, i32) {
    %c0_i32 = arith.constant 0 : i32
    %c0_i32_0 = arith.constant 0 : i32
    %c0_i32_1 = arith.constant 0 : i32
    return %c0_i32, %c0_i32_0 : i32, i32
  }
  func.func @transform_10(%arg0: i32) -> (i32, i32) {
    %c0_i32 = arith.constant 0 : i32
    %c0_i32_0 = arith.constant 0 : i32
    %c0_i32_1 = arith.constant 0 : i32
    return %c0_i32, %c0_i32_0 : i32, i32
  }
  func.func @transform_11(%arg0: i32) -> (i32, i32) {
    %c0_i32 = arith.constant 0 : i32
    %c0_i32_0 = arith.constant 0 : i32
    %c0_i32_1 = arith.constant 0 : i32
    return %c0_i32, %c0_i32_0 : i32, i32
  }
  func.func @transform_12(%arg0: i32) -> (i32, i32) {
    %c0_i32 = arith.constant 0 : i32
    %c0_i32_0 = arith.constant 0 : i32
    %c0_i32_1 = arith.constant 0 : i32
    return %c0_i32, %c0_i32_0 : i32, i32
  }
  func.func @transform_13(%arg0: i32) -> (i32, i32) {
    %c0_i32 = arith.constant 0 : i32
    %c0_i32_0 = arith.constant 0 : i32
    %c0_i32_1 = arith.constant 0 : i32
    return %c0_i32, %c0_i32_0 : i32, i32
  }
  func.func @transform_14(%arg0: i32) -> (i32, i32) {
    %c0_i32 = arith.constant 0 : i32
    %c0_i32_0 = arith.constant 0 : i32
    %c0_i32_1 = arith.constant 0 : i32
    return %c0_i32, %c0_i32_0 : i32, i32
  }
  func.func @transform_15(%arg0: i32) -> (i32, i32) {
    %c0_i32 = arith.constant 0 : i32
    %c0_i32_0 = arith.constant 0 : i32
    return %arg0, %c0_i32 : i32, i32
  }
}

</mosaic_0001>

<llo_original>
// kernel: contrastive_fine_tuner_forward.1
$region0: #{contrastive_fine_tuner_forward.1}
  #allocation0 [shape = 'u32[]', space=smem, size = 0x4, offset = 0x4, fixed_abs, tag = 'smem constant byte address 0x4 - core index']
  #allocation1 [shape = 'u32[72,128]{1,0:T(1,128)}', space=vmem, size = 0x9000, scoped, tag = 'internal scratch']
  #allocation2 [shape = 'f32[1,1]{1,0:T(1,128)S(1)}', space=vmem, size = 0x200, scoped, tag = 'scoped memory for contrastive_fine_tuner_forward.1']
  %s0 = inlined_call_operand.vmem [shape: bf16[8,32], index: 0, kind: input, shape index: {}]
  %s1 = inlined_call_operand.vmem [shape: bf16[32,256], index: 1, kind: input, shape index: {}]
  %s2 = inlined_call_operand.vmem [shape: f32[1,256], index: 2, kind: input, shape index: {}]
  %s3 = inlined_call_operand.vmem [shape: f32[1,128], index: 3, kind: input, shape index: {}]
  %s4 = inlined_call_operand.vmem [shape: f32[1,128], index: 4, kind: input, shape index: {}]
  %s5 = inlined_call_operand.vmem [shape: f32[1,128], index: 5, kind: input, shape index: {}]
  %s6 = inlined_call_operand.vmem [shape: f32[1,128], index: 6, kind: input, shape index: {}]
  %s7 = inlined_call_operand.vmem [shape: bf16[128,128], index: 7, kind: input, shape index: {}]
  %s8 = inlined_call_operand.vmem [shape: f32[1,128], index: 8, kind: input, shape index: {}]
  %s9 = inlined_call_operand.vmem [shape: f32[1,128], index: 9, kind: input, shape index: {}]
  %s10 = inlined_call_operand.vmem [shape: f32[1,128], index: 10, kind: input, shape index: {}]
  %s11 = inlined_call_operand.vmem [shape: bf16[128,128], index: 11, kind: input, shape index: {}]
  %s12 = inlined_call_operand.vmem [shape: f32[1,128], index: 12, kind: input, shape index: {}]
  %s13 = inlined_call_operand.vmem [shape: f32[1,128], index: 13, kind: input, shape index: {}]
  %s14 = inlined_call_operand.<no memory space> [shape: f32[1,1], index: 14, kind: input, shape index: {}]
  %s15 = inlined_call_operand.vmem [shape: f32[8,128], index: 15, kind: output, shape index: {}]
  %s16 = sld [smem:[#allocation0]]
  $region70: #{contrastive_fine_tuner_forward.1} parent=0
    _
  %s18 = ssub.s32 1, %s16
  %s19 = scalar_select 0, %s18, %s16
  %v20 = vstv %s14
  %21 = vst [vmem:[#allocation2] sm:$0x1] %v20
  // Predicated region
  $region2: #{contrastive_fine_tuner_forward.1} parent=0 // pred_check
    _
  $region3: #{contrastive_fine_tuner_forward.1} parent=0 // pred_check_branch
    %23 = sbr.rel (0) target = $region5
  $region4: #{contrastive_fine_tuner_forward.1} parent=0 // pred_region
    _
  $region5: #{contrastive_fine_tuner_forward.1} parent=0 // pred_fallthru
    _
  // Predicated region
  $region6: #{contrastive_fine_tuner_forward.1} parent=0 // pred_check
    _
  $region7: #{contrastive_fine_tuner_forward.1} parent=0 // pred_check_branch
    %25 = sbr.rel (0) target = $region9
  $region8: #{contrastive_fine_tuner_forward.1} parent=0 // pred_region
    _
  $region9: #{contrastive_fine_tuner_forward.1} parent=0 // pred_fallthru
    _
  // Predicated region
  $region10: #{contrastive_fine_tuner_forward.1} parent=0 // pred_check
    _
  $region11: #{contrastive_fine_tuner_forward.1} parent=0 // pred_check_branch
    %27 = sbr.rel (0) target = $region13
  $region12: #{contrastive_fine_tuner_forward.1} parent=0 // pred_region
    _
  $region13: #{contrastive_fine_tuner_forward.1} parent=0 // pred_fallthru
    _
  // Predicated region
  $region14: #{contrastive_fine_tuner_forward.1} parent=0 // pred_check
    _
  $region15: #{contrastive_fine_tuner_forward.1} parent=0 // pred_check_branch
    %29 = sbr.rel (0) target = $region17
  $region16: #{contrastive_fine_tuner_forward.1} parent=0 // pred_region
    _
  $region17: #{contrastive_fine_tuner_forward.1} parent=0 // pred_fallthru
    _
  // Predicated region
  $region18: #{contrastive_fine_tuner_forward.1} parent=0 // pred_check
    _
  $region19: #{contrastive_fine_tuner_forward.1} parent=0 // pred_check_branch
    %31 = sbr.rel (0) target = $region21
  $region20: #{contrastive_fine_tuner_forward.1} parent=0 // pred_region
    _
  $region21: #{contrastive_fine_tuner_forward.1} parent=0 // pred_fallthru
    _
  // Predicated region
  $region22: #{contrastive_fine_tuner_forward.1} parent=0 // pred_check
    _
  $region23: #{contrastive_fine_tuner_forward.1} parent=0 // pred_check_branch
    %33 = sbr.rel (0) target = $region25
  $region24: #{contrastive_fine_tuner_forward.1} parent=0 // pred_region
    _
  $region25: #{contrastive_fine_tuner_forward.1} parent=0 // pred_fallthru
    _
  // Predicated region
  $region26: #{contrastive_fine_tuner_forward.1} parent=0 // pred_check
    _
  $region27: #{contrastive_fine_tuner_forward.1} parent=0 // pred_check_branch
    %35 = sbr.rel (0) target = $region29
  $region28: #{contrastive_fine_tuner_forward.1} parent=0 // pred_region
    _
  $region29: #{contrastive_fine_tuner_forward.1} parent=0 // pred_fallthru
    _
  // Predicated region
  $region30: #{contrastive_fine_tuner_forward.1} parent=0 // pred_check
    _
  $region31: #{contrastive_fine_tuner_forward.1} parent=0 // pred_check_branch
    %37 = sbr.rel (0) target = $region33
  $region32: #{contrastive_fine_tuner_forward.1} parent=0 // pred_region
    _
  $region33: #{contrastive_fine_tuner_forward.1} parent=0 // pred_fallthru
    _
  // Predicated region
  $region34: #{contrastive_fine_tuner_forward.1} parent=0 // pred_check
    _
  $region35: #{contrastive_fine_tuner_forward.1} parent=0 // pred_check_branch
    %39 = sbr.rel (0) target = $region37
  $region36: #{contrastive_fine_tuner_forward.1} parent=0 // pred_region
    _
  $region37: #{contrastive_fine_tuner_forward.1} parent=0 // pred_fallthru
    _
  // Predicated region
  $region38: #{contrastive_fine_tuner_forward.1} parent=0 // pred_check
    _
  $region39: #{contrastive_fine_tuner_forward.1} parent=0 // pred_check_branch
    %41 = sbr.rel (0) target = $region41
  $region40: #{contrastive_fine_tuner_forward.1} parent=0 // pred_region
    _
  $region41: #{contrastive_fine_tuner_forward.1} parent=0 // pred_fallthru
    _
  // Predicated region
  $region42: #{contrastive_fine_tuner_forward.1} parent=0 // pred_check
    _
  $region43: #{contrastive_fine_tuner_forward.1} parent=0 // pred_check_branch
    %43 = sbr.rel (0) target = $region45
  $region44: #{contrastive_fine_tuner_forward.1} parent=0 // pred_region
    _
  $region45: #{contrastive_fine_tuner_forward.1} parent=0 // pred_fallthru
    _
  // Predicated region
  $region46: #{contrastive_fine_tuner_forward.1} parent=0 // pred_check
    _
  $region47: #{contrastive_fine_tuner_forward.1} parent=0 // pred_check_branch
    %45 = sbr.rel (0) target = $region49
  $region48: #{contrastive_fine_tuner_forward.1} parent=0 // pred_region
    _
  $region49: #{contrastive_fine_tuner_forward.1} parent=0 // pred_fallthru
    _
  // Predicated region
  $region50: #{contrastive_fine_tuner_forward.1} parent=0 // pred_check
    _
  $region51: #{contrastive_fine_tuner_forward.1} parent=0 // pred_check_branch
    %47 = sbr.rel (0) target = $region53
  $region52: #{contrastive_fine_tuner_forward.1} parent=0 // pred_region
    _
  $region53: #{contrastive_fine_tuner_forward.1} parent=0 // pred_fallthru
    _
  // Predicated region
  $region54: #{contrastive_fine_tuner_forward.1} parent=0 // pred_check
    _
  $region55: #{contrastive_fine_tuner_forward.1} parent=0 // pred_check_branch
    %49 = sbr.rel (0) target = $region57
  $region56: #{contrastive_fine_tuner_forward.1} parent=0 // pred_region
    _
  $region57: #{contrastive_fine_tuner_forward.1} parent=0 // pred_fallthru
    _
  // Predicated region
  $region58: #{contrastive_fine_tuner_forward.1} parent=0 // pred_check
    _
  $region59: #{contrastive_fine_tuner_forward.1} parent=0 // pred_check_branch
    %51 = sbr.rel (0) target = $region61
  $region60: #{contrastive_fine_tuner_forward.1} parent=0 // pred_region
    _
  $region61: #{contrastive_fine_tuner_forward.1} parent=0 // pred_fallthru
    _
  %v53 = vld [vmem:[%s0] sm:$0xf]
  %v54 = vld [vmem:[%s1] sm:$0xff]
  %v55 = vld [vmem:[%s1 + $0x8] sm:$0xff]
  %v56 = vld [vmem:[%s1 + $0x10] sm:$0xff]
  %v57 = vld [vmem:[%s1 + $0x18] sm:$0xff]
  %v58 = vld [vmem:[%s2] sm:$0x3]
  %v60 = vperm.slane %v58, 0
  %v61 = vperm.slane %v58, 1
  %v68 = vunpack.c.l.b16 %v54
  %v69 = vunpack.c.h.b16 %v54
  %v70 = vunpack.c.l.b16 %v55
  %v71 = vunpack.c.h.b16 %v55
  %v72 = vunpack.c.l.b16 %v56
  %v73 = vunpack.c.h.b16 %v56
  %v74 = vunpack.c.l.b16 %v57
  %v75 = vunpack.c.h.b16 %v57
  %v76 = vpack.c.b16 %v70, %v68
  %v77 = vpack.c.b16 %v71, %v69
  %v78 = vpack.c.b16 %v74, %v72
  %v79 = vpack.c.b16 %v75, %v73
  %vm84 = vcmask 261120
  %v86 = vsel %vm84, %v53, 0
  %88 = vmatpush.bf16.msra.mxu0 0
  %89 = vmatpush.bf16.msra.mxu0 0
  %90 = vmatpush.bf16.msra.mxu0 0
  %91 = vmatpush.bf16.msra.mxu0 0
  %92 = vmatpush.bf16.msra.mxu0 0
  %93 = vmatpush.bf16.msra.mxu0 0
  %94 = vmatpush.bf16.msra.mxu0 %v78
  %95 = vmatpush.bf16.msra.mxu0 %v76
  %96 = vmatmul.bf16.gmra.mxu0 %v86
  %v97 = vpop.f32.mrf.mxu0
  %v98 = vadd.f32 %v60, %v97
  %v99 = vpop.f32.mrf.mxu0
  %100 = vdwg.mxu0
  %101 = vmatpush.bf16.msra.mxu0 0
  %102 = vmatpush.bf16.msra.mxu0 0
  %103 = vmatpush.bf16.msra.mxu0 0
  %104 = vmatpush.bf16.msra.mxu0 0
  %105 = vmatpush.bf16.msra.mxu0 0
  %106 = vmatpush.bf16.msra.mxu0 0
  %107 = vmatpush.bf16.msra.mxu0 %v79
  %108 = vmatpush.bf16.msra.mxu0 %v77
  %109 = vmatmul.bf16.gmra.mxu0 %v86
  %v110 = vpop.f32.mrf.mxu0
  %v111 = vadd.f32 %v61, %v110
  %v112 = vpop.f32.mrf.mxu0
  %113 = vdwg.mxu0
  %v114 = vld [vmem:[%s3] sm:$0x1]
  %v115 = vld [vmem:[%s4] sm:$0x1]
  %116 = vadd.xlane.f32.xlu0 %v98
  %v117 = vpop.xlane.xlu0 %116
  %v118 = vrcp.pop 128.0
  %v119 = vmul.f32 128.0, %v118
  %v120 = vsub.f32 1.0, %v119
  %v121 = vmul.f32 %v118, %v120
  %v122 = vadd.f32 %v118, %v121
  %vm123 = vweird.f32 %v118
  %v124 = vsel %vm123, %v118, %v122
  %v125 = vmul.f32 %v117, %v124
  %v126 = vmul.f32 %v98, %v98
  %127 = vadd.xlane.f32.xlu0 %v126
  %v128 = vpop.xlane.xlu0 %127
  %v129 = vmul.f32 %v128, %v124
  %v130 = vmul.f32 %v125, %v125
  %v131 = vsub.f32 %v129, %v130
  %v132 = vsub.f32 %v98, %v125
  %v133 = vadd.f32 %v131, 1e-05
  %v134 = vrsqrt.pop %v133
  %v135 = vmul.f32 %v134, %v133
  %v136 = vmul.f32 %v135, %v134
  %v137 = vmul.f32 0.5, %v136
  %v138 = vsub.f32 1.5, %v137
  %v139 = vmul.f32 %v134, %v138
  %vm140 = vweird.f32 %v133
  %vm141 = vweird.f32 %v134
  %vm142 = vmor %vm140, %vm141
  %v143 = vsel %vm142, %v134, %v139
  %v144 = vmul.f32 %v132, %v143
  %v146 = vperm.slane %v114, 0
  %v148 = vmul.f32 %v144, %v146
  %v150 = vperm.slane %v115, 0
  %v152 = vadd.f32 %v148, %v150
  %v153 = vxor.u32 %v152, 2147483648
  %v154 = vmul.f32 %v153, 1.442695
  %v155 = vpow.pop %v154
  %v156 = vadd.f32 %v155, 1.0
  %v157 = vrcp.pop %v156
  %v158 = vmul.f32 %v156, %v157
  %v159 = vsub.f32 1.0, %v158
  %v160 = vmul.f32 %v157, %v159
  %v161 = vadd.f32 %v157, %v160
  %vm162 = vweird.f32 %v156
  %vm163 = vweird.f32 %v157
  %vm164 = vmor %vm162, %vm163
  %v165 = vsel %vm164, %v157, %v161
  %v166 = vand.u32 2147483647, %v156
  %vm167 = vcmp.eq.f32.partialorder %v166, 8.507059e+37
  %v168 = vand.u32 %v156, 2147483648
  %v169 = vor.u32 1.1754944e-38, %v168
  %v170 = vsel %vm167, %v169, %v165
  %v171 = vmul.f32 1.0, %v170
  %v172 = vmul.f32 %v152, %v171
  %v173 = vld [vmem:[%s5] sm:$0x1]
  %v174 = vld [vmem:[%s6] sm:$0x1]
  %175 = vadd.xlane.f32.xlu0 %v111
  %v176 = vpop.xlane.xlu0 %175
  %v177 = vmul.f32 %v176, %v124
  %v178 = vmul.f32 %v111, %v111
  %179 = vadd.xlane.f32.xlu0 %v178
  %v180 = vpop.xlane.xlu0 %179
  %v181 = vmul.f32 %v180, %v124
  %v182 = vmul.f32 %v177, %v177
  %v183 = vsub.f32 %v181, %v182
  %v184 = vsub.f32 %v111, %v177
  %v185 = vadd.f32 %v183, 1e-05
  %v186 = vrsqrt.pop %v185
  %v187 = vmul.f32 %v186, %v185
  %v188 = vmul.f32 %v187, %v186
  %v189 = vmul.f32 0.5, %v188
  %v190 = vsub.f32 1.5, %v189
  %v191 = vmul.f32 %v186, %v190
  %vm192 = vweird.f32 %v185
  %vm193 = vweird.f32 %v186
  %vm194 = vmor %vm192, %vm193
  %v195 = vsel %vm194, %v186, %v191
  %v196 = vmul.f32 %v184, %v195
  %v198 = vperm.slane %v173, 0
  %v200 = vmul.f32 %v196, %v198
  %v202 = vperm.slane %v174, 0
  %v204 = vadd.f32 %v200, %v202
  %v205 = vxor.u32 %v204, 2147483648
  %v206 = vmul.f32 %v205, 1.442695
  %v207 = vpow.pop %v206
  %v208 = vadd.f32 %v207, 1.0
  %v209 = vrcp.pop %v208
  %v210 = vmul.f32 %v208, %v209
  %v211 = vsub.f32 1.0, %v210
  %v212 = vmul.f32 %v209, %v211
  %v213 = vadd.f32 %v209, %v212
  %vm214 = vweird.f32 %v208
  %vm215 = vweird.f32 %v209
  %vm216 = vmor %vm214, %vm215
  %v217 = vsel %vm216, %v209, %v213
  %v218 = vand.u32 2147483647, %v208
  %vm219 = vcmp.eq.f32.partialorder %v218, 8.507059e+37
  %v220 = vand.u32 %v208, 2147483648
  %v221 = vor.u32 1.1754944e-38, %v220
  %v222 = vsel %vm219, %v221, %v217
  %v223 = vmul.f32 1.0, %v222
  %v224 = vmul.f32 %v204, %v223
  %v225 = vpack.c.bf16 %v172, %v172
  %v226 = vld [vmem:[%s7] sm:$0xf]
  %v227 = vld [vmem:[%s7 + $0x4] sm:$0xf]
  %v228 = vld [vmem:[%s7 + $0x8] sm:$0xf]
  %v229 = vld [vmem:[%s7 + $0xc] sm:$0xf]
  %v230 = vld [vmem:[%s7 + $0x10] sm:$0xf]
  %v231 = vld [vmem:[%s7 + $0x14] sm:$0xf]
  %v232 = vld [vmem:[%s7 + $0x18] sm:$0xf]
  %v233 = vld [vmem:[%s7 + $0x1c] sm:$0xf]
  %v234 = vld [vmem:[%s7 + $0x20] sm:$0xf]
  %v235 = vld [vmem:[%s7 + $0x24] sm:$0xf]
  %v236 = vld [vmem:[%s7 + $0x28] sm:$0xf]
  %v237 = vld [vmem:[%s7 + $0x2c] sm:$0xf]
  %v238 = vld [vmem:[%s7 + $0x30] sm:$0xf]
  %v239 = vld [vmem:[%s7 + $0x34] sm:$0xf]
  %v240 = vld [vmem:[%s7 + $0x38] sm:$0xf]
  %v241 = vld [vmem:[%s7 + $0x3c] sm:$0xf]
  %v242 = vld [vmem:[%s8] sm:$0x1]
  %v244 = vperm.slane %v242, 0
  %v262 = vunpack.c.l.b16 %v226
  %v263 = vunpack.c.l.b16 %v227
  %v264 = vunpack.c.l.b16 %v228
  %v265 = vunpack.c.l.b16 %v229
  %v266 = vunpack.c.l.b16 %v230
  %v267 = vunpack.c.l.b16 %v231
  %v268 = vunpack.c.l.b16 %v232
  %v269 = vunpack.c.l.b16 %v233
  %v270 = vunpack.c.l.b16 %v234
  %v271 = vunpack.c.l.b16 %v235
  %v272 = vunpack.c.l.b16 %v236
  %v273 = vunpack.c.l.b16 %v237
  %v274 = vunpack.c.l.b16 %v238
  %v275 = vunpack.c.l.b16 %v239
  %v276 = vunpack.c.l.b16 %v240
  %v277 = vunpack.c.l.b16 %v241
  %v278 = vpack.c.b16 %v263, %v262
  %v279 = vpack.c.b16 %v265, %v264
  %v280 = vpack.c.b16 %v267, %v266
  %v281 = vpack.c.b16 %v269, %v268
  %v282 = vpack.c.b16 %v271, %v270
  %v283 = vpack.c.b16 %v273, %v272
  %v284 = vpack.c.b16 %v275, %v274
  %v285 = vpack.c.b16 %v277, %v276
  %294 = vmatpush.bf16.msra.mxu0 %v285
  %295 = vmatpush.bf16.msra.mxu0 %v284
  %296 = vmatpush.bf16.msra.mxu0 %v283
  %297 = vmatpush.bf16.msra.mxu0 %v282
  %298 = vmatpush.bf16.msra.mxu0 %v281
  %299 = vmatpush.bf16.msra.mxu0 %v280
  %300 = vmatpush.bf16.msra.mxu0 %v279
  %301 = vmatpush.bf16.msra.mxu0 %v278
  %302 = vmatmul.bf16.gmra.mxu0 %v225
  %v303 = vpop.f32.mrf.mxu0
  %v304 = vadd.f32 %v244, %v303
  %v305 = vpop.f32.mrf.mxu0
  %306 = vdwg.mxu0
  %v307 = vld [vmem:[%s9] sm:$0x1]
  %v308 = vld [vmem:[%s10] sm:$0x1]
  %309 = vadd.xlane.f32.xlu0 %v304
  %v310 = vpop.xlane.xlu0 %309
  %v311 = vmul.f32 %v310, %v124
  %v312 = vmul.f32 %v304, %v304
  %313 = vadd.xlane.f32.xlu0 %v312
  %v314 = vpop.xlane.xlu0 %313
  %v315 = vmul.f32 %v314, %v124
  %v316 = vmul.f32 %v311, %v311
  %v317 = vsub.f32 %v315, %v316
  %v318 = vsub.f32 %v304, %v311
  %v319 = vadd.f32 %v317, 1e-05
  %v320 = vrsqrt.pop %v319
  %v321 = vmul.f32 %v320, %v319
  %v322 = vmul.f32 %v321, %v320
  %v323 = vmul.f32 0.5, %v322
  %v324 = vsub.f32 1.5, %v323
  %v325 = vmul.f32 %v320, %v324
  %vm326 = vweird.f32 %v319
  %vm327 = vweird.f32 %v320
  %vm328 = vmor %vm326, %vm327
  %v329 = vsel %vm328, %v320, %v325
  %v330 = vmul.f32 %v318, %v329
  %v332 = vperm.slane %v307, 0
  %v334 = vmul.f32 %v330, %v332
  %v336 = vperm.slane %v308, 0
  %v338 = vadd.f32 %v334, %v336
  %v339 = vxor.u32 %v338, 2147483648
  %v340 = vmul.f32 %v339, 1.442695
  %v341 = vpow.pop %v340
  %v342 = vadd.f32 %v341, 1.0
  %v343 = vrcp.pop %v342
  %v344 = vmul.f32 %v342, %v343
  %v345 = vsub.f32 1.0, %v344
  %v346 = vmul.f32 %v343, %v345
  %v347 = vadd.f32 %v343, %v346
  %vm348 = vweird.f32 %v342
  %vm349 = vweird.f32 %v343
  %vm350 = vmor %vm348, %vm349
  %v351 = vsel %vm350, %v343, %v347
  %v352 = vand.u32 2147483647, %v342
  %vm353 = vcmp.eq.f32.partialorder %v352, 8.507059e+37
  %v354 = vand.u32 %v342, 2147483648
  %v355 = vor.u32 1.1754944e-38, %v354
  %v356 = vsel %vm353, %v355, %v351
  %v357 = vmul.f32 1.0, %v356
  %v358 = vmul.f32 %v338, %v357
  %v359 = vpack.c.bf16 %v358, %v358
  %v360 = vld [vmem:[%s11] sm:$0xf]
  %v361 = vld [vmem:[%s11 + $0x4] sm:$0xf]
  %v362 = vld [vmem:[%s11 + $0x8] sm:$0xf]
  %v363 = vld [vmem:[%s11 + $0xc] sm:$0xf]
  %v364 = vld [vmem:[%s11 + $0x10] sm:$0xf]
  %v365 = vld [vmem:[%s11 + $0x14] sm:$0xf]
  %v366 = vld [vmem:[%s11 + $0x18] sm:$0xf]
  %v367 = vld [vmem:[%s11 + $0x1c] sm:$0xf]
  %v368 = vld [vmem:[%s11 + $0x20] sm:$0xf]
  %v369 = vld [vmem:[%s11 + $0x24] sm:$0xf]
  %v370 = vld [vmem:[%s11 + $0x28] sm:$0xf]
  %v371 = vld [vmem:[%s11 + $0x2c] sm:$0xf]
  %v372 = vld [vmem:[%s11 + $0x30] sm:$0xf]
  %v373 = vld [vmem:[%s11 + $0x34] sm:$0xf]
  %v374 = vld [vmem:[%s11 + $0x38] sm:$0xf]
  %v375 = vld [vmem:[%s11 + $0x3c] sm:$0xf]
  %v376 = vld [vmem:[%s12] sm:$0x1]
  %v378 = vperm.slane %v376, 0
  %v396 = vunpack.c.l.b16 %v360
  %v397 = vunpack.c.l.b16 %v361
  %v398 = vunpack.c.l.b16 %v362
  %v399 = vunpack.c.l.b16 %v363
  %v400 = vunpack.c.l.b16 %v364
  %v401 = vunpack.c.l.b16 %v365
  %v402 = vunpack.c.l.b16 %v366
  %v403 = vunpack.c.l.b16 %v367
  %v404 = vunpack.c.l.b16 %v368
  %v405 = vunpack.c.l.b16 %v369
  %v406 = vunpack.c.l.b16 %v370
  %v407 = vunpack.c.l.b16 %v371
  %v408 = vunpack.c.l.b16 %v372
  %v409 = vunpack.c.l.b16 %v373
  %v410 = vunpack.c.l.b16 %v374
  %v411 = vunpack.c.l.b16 %v375
  %v412 = vpack.c.b16 %v397, %v396
  %v413 = vpack.c.b16 %v399, %v398
  %v414 = vpack.c.b16 %v401, %v400
  %v415 = vpack.c.b16 %v403, %v402
  %v416 = vpack.c.b16 %v405, %v404
  %v417 = vpack.c.b16 %v407, %v406
  %v418 = vpack.c.b16 %v409, %v408
  %v419 = vpack.c.b16 %v411, %v410
  %428 = vmatpush.bf16.msra.mxu0 %v419
  %429 = vmatpush.bf16.msra.mxu0 %v418
  %430 = vmatpush.bf16.msra.mxu0 %v417
  %431 = vmatpush.bf16.msra.mxu0 %v416
  %432 = vmatpush.bf16.msra.mxu0 %v415
  %433 = vmatpush.bf16.msra.mxu0 %v414
  %434 = vmatpush.bf16.msra.mxu0 %v413
  %435 = vmatpush.bf16.msra.mxu0 %v412
  %436 = vmatmul.bf16.gmra.mxu0 %v359
  %v437 = vpop.f32.mrf.mxu0
  %v438 = vadd.f32 %v378, %v437
  %v439 = vpop.f32.mrf.mxu0
  %440 = vdwg.mxu0
  %v441 = vld [vmem:[%s13] sm:$0x1]
  %v443 = vperm.slane %v441, 0
  %v445 = vmul.f32 %v224, %v443
  %446 = vadd.xlane.f32.xlu0 %v445
  %v447 = vpop.xlane.xlu0 %446
  %v448 = vld [vmem:[#allocation2] sm:$0x1]
  %v450 = vperm.slane %v448, 0
  %v452 = vadd.f32 %v447, %v450
  %v453 = vlaneseq
  %v454 = vand.u32 %v453, 127
  %vm455 = vcmp.eq.s32.totalorder %v454, 4
  %457 = vset.pattern.permute.xlu0 0
  %458 = vperm.xlu0 %457, %v452
  %v459 = vpop.permute.xlu0 %458
  %v461 = vsel %vm455, %v459, %v438
  %462 = vst [vmem:[%s15] sm:$0xff] %v461
  // Predicated region
  $region62: #{contrastive_fine_tuner_forward.1} parent=0 // pred_check
    _
  $region63: #{contrastive_fine_tuner_forward.1} parent=0 // pred_check_branch
    %464 = sbr.rel (0) target = $region65
  $region64: #{contrastive_fine_tuner_forward.1} parent=0 // pred_region
    _
  $region65: #{contrastive_fine_tuner_forward.1} parent=0 // pred_fallthru
    _
  // Predicated region
  $region66: #{contrastive_fine_tuner_forward.1} parent=0 // pred_check
    _
  $region67: #{contrastive_fine_tuner_forward.1} parent=0 // pred_check_branch
    %466 = sbr.rel (0) target = $region69
  $region68: #{contrastive_fine_tuner_forward.1} parent=0 // pred_region
    _
  $region69: #{contrastive_fine_tuner_forward.1} parent=0 // pred_fallthru
    _

</llo_original>
